<compile_context>
chip_gen: v7x
topology: tpu7x:2x2x1
jax: 0.10.0
libtpu: 0.0.40
codegen_flags: <defaults>
</compile_context>

<pallas_src>
import functools

import jax
import jax.numpy as jnp
from jax.experimental import pallas as pl
from jax.experimental.pallas import tpu as pltpu

LANE = 128
SUBLANE = 8
TARGET_BLOCK_ROWS = 2048   # 2048 x 128 x 4B = 1 MiB per f32 tile


def _round_up(x, m):
    return (x + m - 1) // m * m


def stats_kernel(x_ref, stats_ref, acc_ref, *, n_valid, block_rows, needs_mask):
    """Pass 1: accumulate pivot-shifted sum / sum-of-squares across grid steps;
    compute and store (mean, inv_std) once in the final step."""
    i = pl.program_id(0)

    @pl.when(i == 0)
    def _():
        # Pivot = first element; shifting before squaring avoids catastrophic
        # cancellation in (sum_sq - N*mean^2) for non-zero-mean data.
        acc_ref[0] = 0.0                                   # sum(x - pivot)
        acc_ref[1] = 0.0                                   # sum((x - pivot)^2)
        acc_ref[2] = x_ref[0, 0].astype(jnp.float32)       # pivot

    pivot = acc_ref[2]
    x = x_ref[...].astype(jnp.float32)
    d = x - pivot
    if needs_mask:
        r = jax.lax.broadcasted_iota(jnp.int32, x.shape, 0)
        c = jax.lax.broadcasted_iota(jnp.int32, x.shape, 1)
        gidx = (i * block_rows + r) * LANE + c
        d = jnp.where(gidx < n_valid, d, 0.0)
    acc_ref[0] += jnp.sum(d)
    acc_ref[1] += jnp.sum(d * d)

    @pl.when(i == pl.num_programs(0) - 1)
    def _():
        n = float(n_valid)
        ms = acc_ref[0] / n                                # mean(x) - pivot
        var = (acc_ref[1] - n * ms * ms) / (n - 1.0)       # unbiased (torch.var)
        var = jnp.maximum(var, 0.0)
        stats_ref[0] = ms + acc_ref[2]                     # mean
        stats_ref[1] = 1.0 / jnp.sqrt(var + 1e-5)          # inv_std


def norm_kernel(stats_ref, x_ref, o_ref):
    """Pass 2: o = (x - mean) * inv_std using precomputed global stats."""
    mean = stats_ref[0]
    inv_std = stats_ref[1]
    x = x_ref[...].astype(jnp.float32)
    o_ref[...] = ((x - mean) * inv_std).astype(o_ref.dtype)


def fn_forward(feature):
    """JAX/Pallas equivalent of FN.forward for an NCHW tensor."""
    orig_shape = feature.shape
    total = int(feature.size)
    assert total >= 2, "need at least 2 elements for unbiased variance"

    rows = pl.cdiv(total, LANE)
    # Largest tile <= target that keeps (block_rows % 8 == 0); tiny inputs get
    # a single (rounded-up) block.  Never stages the whole tensor unbounded.
    block_rows = min(TARGET_BLOCK_ROWS, _round_up(rows, SUBLANE))
    padded_rows = _round_up(rows, block_rows)
    padded_total = padded_rows * LANE
    needs_mask = padded_total != total

    flat = feature.reshape(-1)
    if needs_mask:
        flat = jnp.pad(flat, (0, padded_total - total))
    x2 = flat.reshape(padded_rows, LANE)
    grid = (padded_rows // block_rows,)

    # Pass 1: global reduction -> (mean, inv_std) in SMEM.
    stats = pl.pallas_call(
        functools.partial(
            stats_kernel,
            n_valid=total,
            block_rows=block_rows,
            needs_mask=needs_mask,
        ),
        out_shape=jax.ShapeDtypeStruct((2,), jnp.float32),
        grid=grid,
        in_specs=[pl.BlockSpec((block_rows, LANE), lambda i: (i, 0))],
        out_specs=pl.BlockSpec(memory_space=pltpu.MemorySpace.SMEM),
        scratch_shapes=[pltpu.SMEM((3,), jnp.float32)],
        compiler_params=pltpu.CompilerParams(
            dimension_semantics=("arbitrary",)),
    )(x2)

    # Pass 2: elementwise normalization (fully parallel across tiles).
    # TODO(synk): for v7x, pass 1 could additionally be split across the two
    # TensorCores with per-core partial sums; kept serial here for simplicity.
    out2 = pl.pallas_call(
        norm_kernel,
        out_shape=jax.ShapeDtypeStruct((padded_rows, LANE), feature.dtype),
        grid=grid,
        in_specs=[
            pl.BlockSpec(memory_space=pltpu.MemorySpace.SMEM),
            pl.BlockSpec((block_rows, LANE), lambda i: (i, 0)),
        ],
        out_specs=pl.BlockSpec((block_rows, LANE), lambda i: (i, 0)),
        compiler_params=pltpu.CompilerParams(
            dimension_semantics=("parallel",)),
    )(stats, x2)

    out_flat = out2.reshape(-1)
    if needs_mask:
        out_flat = out_flat[:total]
    return out_flat.reshape(orig_shape)


def fn_reference(feature):
    x = feature.astype(jnp.float32)
    mean = jnp.mean(x)
    var = jnp.var(x, ddof=1)  # torch.var default is unbiased
    return ((x - mean) / jnp.sqrt(var + 1e-5)).astype(feature.dtype)


if __name__ == "__main__":
    key = jax.random.PRNGKey(0)
    x = jax.random.normal(key, (2, 4, 16, 16), dtype=jnp.float32)

    out = fn_forward(x)
    out = jax.block_until_ready(out)

    ref = fn_reference(x)
    assert out.shape == x.shape and out.dtype == x.dtype
    assert jnp.max(jnp.abs(out - ref)) < 1e-4, "mismatch vs reference"

    # Also exercise a shape whose flattened size needs padding/masking.
    y = jax.random.normal(key, (1, 3, 7, 11), dtype=jnp.float32) * 3.0 + 5.0
    out_y = jax.block_until_ready(fn_forward(y))
    ref_y = fn_reference(y)
    assert jnp.max(jnp.abs(out_y - ref_y)) < 1e-3, "mismatch vs reference (padded case)"

    print("KERNEL_OK")
</pallas_src>

<mosaic_0001>
module attributes {stable_mosaic.version = 11 : i64} {
  func.func @stats_kernel(%arg0: i32, %arg1: memref<16x128xf32, #tpu.memory_space<vmem>>, %arg2: memref<2xf32, #tpu.memory_space<smem>>, %arg3: memref<3xf32, #tpu.memory_space<smem>>) attributes {dimension_semantics = [#tpu.dimension_semantics<arbitrary>], iteration_bounds = array<i64: 1>, scalar_prefetch = 0 : i64, scratch_operands = 1 : i64, tpu.core_type = #tpu.core_type<tc>, window_params = [{transform_indices = @transform_0, window_bounds = array<i64: 16, 128>}, {transform_indices = @transform_1, window_bounds = array<i64: 2>}]} {
    %c0_i32 = arith.constant 0 : i32
    %0 = arith.cmpi eq, %arg0, %c0_i32 : i32
    %1 = arith.extui %0 : i1 to i32
    %c0_i32_0 = arith.constant 0 : i32
    %2 = arith.cmpi ne, %1, %c0_i32_0 : i32
    scf.if %2 {
      %cst_8 = arith.constant 0.000000e+00 : f32
      %c0_9 = arith.constant 0 : index
      %25 = memref.load %arg3[%c0_9] : memref<3xf32, #tpu.memory_space<smem>>
      memref.store %cst_8, %arg3[%c0_9] : memref<3xf32, #tpu.memory_space<smem>>
      %cst_10 = arith.constant 0.000000e+00 : f32
      %c1_11 = arith.constant 1 : index
      %26 = memref.load %arg3[%c1_11] : memref<3xf32, #tpu.memory_space<smem>>
      memref.store %cst_10, %arg3[%c1_11] : memref<3xf32, #tpu.memory_space<smem>>
      %c0_12 = arith.constant 0 : index
      %c0_13 = arith.constant 0 : index
      %27 = vector.load %arg1[%c0_12, %c0_13] : memref<16x128xf32, #tpu.memory_space<vmem>>, vector<1x1xf32>
      %28 = vector.extract %27[0, 0] : f32 from vector<1x1xf32>
      %c2_14 = arith.constant 2 : index
      %29 = memref.load %arg3[%c2_14] : memref<3xf32, #tpu.memory_space<smem>>
      memref.store %28, %arg3[%c2_14] : memref<3xf32, #tpu.memory_space<smem>>
    } else {
    }
    %c2 = arith.constant 2 : index
    %3 = memref.load %arg3[%c2] : memref<3xf32, #tpu.memory_space<smem>>
    %c0 = arith.constant 0 : index
    %c0_1 = arith.constant 0 : index
    %4 = vector.load %arg1[%c0, %c0_1] : memref<16x128xf32, #tpu.memory_space<vmem>>, vector<16x128xf32>
    %5 = vector.broadcast %3 : f32 to vector<16x128xf32>
    %6 = arith.subf %4, %5 : vector<16x128xf32>
    %c0_2 = arith.constant 0 : index
    %7 = memref.load %arg3[%c0_2] : memref<3xf32, #tpu.memory_space<smem>>
    %8 = vector.shape_cast %6 : vector<16x128xf32> to vector<1x16x128xf32>
    %cst = arith.constant dense<0.000000e+00> : vector<1xf32>
    %9 = vector.multi_reduction <add>, %8, %cst [1, 2] : vector<1x16x128xf32> to vector<1xf32>
    %10 = vector.shape_cast %9 : vector<1xf32> to vector<1x1x1xf32>
    %11 = vector.extract %10[0, 0, 0] : f32 from vector<1x1x1xf32>
    %12 = arith.addf %7, %11 : f32
    %c0_3 = arith.constant 0 : index
    %13 = memref.load %arg3[%c0_3] : memref<3xf32, #tpu.memory_space<smem>>
    memref.store %12, %arg3[%c0_3] : memref<3xf32, #tpu.memory_space<smem>>
    %c1 = arith.constant 1 : index
    %14 = memref.load %arg3[%c1] : memref<3xf32, #tpu.memory_space<smem>>
    %15 = arith.mulf %6, %6 : vector<16x128xf32>
    %16 = vector.shape_cast %15 : vector<16x128xf32> to vector<1x16x128xf32>
    %cst_4 = arith.constant dense<0.000000e+00> : vector<1xf32>
    %17 = vector.multi_reduction <add>, %16, %cst_4 [1, 2] : vector<1x16x128xf32> to vector<1xf32>
    %18 = vector.shape_cast %17 : vector<1xf32> to vector<1x1x1xf32>
    %19 = vector.extract %18[0, 0, 0] : f32 from vector<1x1x1xf32>
    %20 = arith.addf %14, %19 : f32
    %c1_5 = arith.constant 1 : index
    %21 = memref.load %arg3[%c1_5] : memref<3xf32, #tpu.memory_space<smem>>
    memref.store %20, %arg3[%c1_5] : memref<3xf32, #tpu.memory_space<smem>>
    %c0_i32_6 = arith.constant 0 : i32
    %22 = arith.cmpi eq, %arg0, %c0_i32_6 : i32
    %23 = arith.extui %22 : i1 to i32
    %c0_i32_7 = arith.constant 0 : i32
    %24 = arith.cmpi ne, %23, %c0_i32_7 : i32
    scf.if %24 {
      %c0_8 = arith.constant 0 : index
      %25 = memref.load %arg3[%c0_8] : memref<3xf32, #tpu.memory_space<smem>>
      %cst_9 = arith.constant 2.048000e+03 : f32
      %26 = arith.divf %25, %cst_9 : f32
      %c1_10 = arith.constant 1 : index
      %27 = memref.load %arg3[%c1_10] : memref<3xf32, #tpu.memory_space<smem>>
      %cst_11 = arith.constant 2.048000e+03 : f32
      %28 = arith.mulf %cst_11, %26 : f32
      %29 = arith.mulf %28, %26 : f32
      %30 = arith.subf %27, %29 : f32
      %cst_12 = arith.constant 2.047000e+03 : f32
      %31 = arith.divf %30, %cst_12 : f32
      %cst_13 = arith.constant 0.000000e+00 : f32
      %32 = arith.maximumf %31, %cst_13 : f32
      %c2_14 = arith.constant 2 : index
      %33 = memref.load %arg3[%c2_14] : memref<3xf32, #tpu.memory_space<smem>>
      %34 = arith.addf %26, %33 : f32
      %c0_15 = arith.constant 0 : index
      %35 = memref.load %arg2[%c0_15] : memref<2xf32, #tpu.memory_space<smem>>
      memref.store %34, %arg2[%c0_15] : memref<2xf32, #tpu.memory_space<smem>>
      %cst_16 = arith.constant 9.99999974E-6 : f32
      %36 = arith.addf %32, %cst_16 : f32
      %37 = math.sqrt %36 : f32
      %cst_17 = arith.constant 1.000000e+00 : f32
      %38 = arith.divf %cst_17, %37 : f32
      %c1_18 = arith.constant 1 : index
      %39 = memref.load %arg2[%c1_18] : memref<2xf32, #tpu.memory_space<smem>>
      memref.store %38, %arg2[%c1_18] : memref<2xf32, #tpu.memory_space<smem>>
    } else {
    }
    return
  }
  func.func @transform_0(%arg0: i32) -> (i32, i32) {
    %c0_i32 = arith.constant 0 : i32
    %c0_i32_0 = arith.constant 0 : i32
    return %arg0, %c0_i32 : i32, i32
  }
  func.func @transform_1(%arg0: i32) -> i32 {
    %c0_i32 = arith.constant 0 : i32
    %c0_i32_0 = arith.constant 0 : i32
    return %c0_i32 : i32
  }
}

</mosaic_0001>

<llo_original>
// kernel: tpu_custom_call.1
$region0: #{tpu_custom_call.1}
  #allocation0 [shape = 'u32[]', space=smem, size = 0x4, offset = 0x4, fixed_abs, tag = 'smem constant byte address 0x4 - core index']
  #allocation1 [shape = 'u32[144,128]{1,0:T(1,128)}', space=vmem, size = 0x12000, scoped, tag = 'internal scratch']
  #allocation2 [shape = 'f32[3]{0:T(128)}', space=smem, size = 0x200, scoped, tag = 'scratch operand']
  %s0 = inlined_call_operand.hbm [shape: f32[16,128], index: 0, kind: input, shape index: {}]
  %s1 = inlined_call_operand.hbm [shape: f32[2], index: 1, kind: output, shape index: {}]
  %s2 = sld [smem:[#allocation0]]
  $region26: #{tpu_custom_call.1} parent=0
    _
  %s4 = ssub.s32 1, %s2
  %s5 = scalar_select 0, %s4, %s2
  $region1: #{tpu_custom_call.1} parent=0
    #allocation3 [shape = 'u8[8192]{0}', space=vmem, size = 0x2000, scoped, tag = 'input window, operand 0, single buffered']
    #allocation4 [shape = 's32[1]{0}', space=sflag, size = 0x4, scoped, tag = 'scoped memory for tpu_custom_call.1']
    #allocation5 [shape = 's32[1]{0}', space=sflag, size = 0x4, scoped, tag = 'scoped memory for tpu_custom_call.1']
    #allocation6 [shape = 'u8[512]{0}', space=smem, size = 0x200, scoped, tag = 'output window, operand 0, single buffered']
    %6 = vsyncpa [#allocation4], 0
    %7 = vsyncpa [#allocation5], 0
    // Predicated region
    $region2: #{tpu_custom_call.1} parent=1 // pred_check
      _
    $region3: #{tpu_custom_call.1} parent=1 // pred_check_branch
      %9 = sbr.rel (0) target = $region5
    $region4: #{tpu_custom_call.1} parent=1 // pred_region
      %s11 = ssub.s32 256, 256
      %12 = vsyncadd [#allocation4], %s11
      %s13 = sshll.u32 [#allocation3], 4
      %s14 = int_to_ptr.vmem [resolvable:$true] %s13
      %19 = dma.hbm_to_vmem [thread:$0]  %s0, 256, %s14, [#allocation4], 128, 128, 8
    $region5: #{tpu_custom_call.1} parent=1 // pred_fallthru
      _
    // Predicated region
    $region6: #{tpu_custom_call.1} parent=1 // pred_check
      _
    $region7: #{tpu_custom_call.1} parent=1 // pred_check_branch
      %21 = sbr.rel (0) target = $region9
    $region8: #{tpu_custom_call.1} parent=1 // pred_region
      %22 = dma.done [#allocation4], 256
    $region9: #{tpu_custom_call.1} parent=1 // pred_fallthru
      _
    %p23 = scmp.eq.s32.totalorder 0, 0
    // Predicated region
    $region10: #{tpu_custom_call.1} parent=1 // pred_check
      %p24 = pneg %p23
    $region11: #{tpu_custom_call.1} parent=1 // pred_check_branch
      %26 = sbr.rel (%p24) target = $region13
    $region12: #{tpu_custom_call.1} parent=1 // pred_region
      %s27 = scalar_lea.smem [#allocation2], 0
      %28 = sst [smem:[%s27]] 0.0
      %s29 = scalar_lea.smem [#allocation2], 1
      %30 = sst [smem:[%s29]] 0.0
      %v31 = vld [vmem:[#allocation3] sm:$0x1]
      %s32 = vtos %v31
      %s33 = scalar_lea.smem [#allocation2], 2
      %34 = sst [smem:[%s33]] %s32
    $region13: #{tpu_custom_call.1} parent=1 // pred_fallthru
      _
    %s35 = sld [smem:[#allocation2 + $0x2]]
    %v36 = vld [vmem:[#allocation3] sm:$0xff]
    %v37 = vld [vmem:[#allocation3 + $0x8] sm:$0xff]
    %v38 = vstv %s35
    %v39 = vsub.f32 %v36, %v38
    %v40 = vsub.f32 %v37, %v38
    %s41 = sld [smem:[#allocation2]]
    %v42 = vadd.f32 %v39, %v40
    %43 = vadd.xlane.f32.xlu0 %v42
    %v44 = vpop.xlane.xlu0 %43
    %v45 = vrot.slane %v44, 4
    %v46 = vadd.f32 %v44, %v45
    %v47 = vrot.slane %v46, 2
    %v48 = vadd.f32 %v46, %v47
    %v49 = vrot.slane %v48, 1
    %v50 = vadd.f32 %v48, %v49
    %s51 = vtos %v50
    %s52 = sadd.f32 %s41, %s51
    %s53 = scalar_lea.smem [#allocation2], 0
    %54 = sst [smem:[%s53]] %s52
    %s55 = sld [smem:[#allocation2 + $0x1]]
    %v56 = vmul.f32 %v39, %v39
    %v57 = vmul.f32 %v40, %v40
    %v58 = vadd.f32 %v56, %v57
    %59 = vadd.xlane.f32.xlu0 %v58
    %v60 = vpop.xlane.xlu0 %59
    %v61 = vrot.slane %v60, 4
    %v62 = vadd.f32 %v60, %v61
    %v63 = vrot.slane %v62, 2
    %v64 = vadd.f32 %v62, %v63
    %v65 = vrot.slane %v64, 1
    %v66 = vadd.f32 %v64, %v65
    %s67 = vtos %v66
    %s68 = sadd.f32 %s55, %s67
    %s69 = scalar_lea.smem [#allocation2], 1
    %70 = sst [smem:[%s69]] %s68
    // Predicated region
    $region14: #{tpu_custom_call.1} parent=1 // pred_check
      %p71 = pneg %p23
    $region15: #{tpu_custom_call.1} parent=1 // pred_check_branch
      %73 = sbr.rel (%p71) target = $region17
    $region16: #{tpu_custom_call.1} parent=1 // pred_region
      %s74 = sld [smem:[#allocation2]]
      %v75 = vrcp.pop 2048.0
      %s76 = vtos %v75
      %s77 = smul.f32 %s74, %s76
      %s78 = sld [smem:[#allocation2 + $0x1]]
      %s79 = smul.f32 %s77, 2048.0
      %s80 = smul.f32 %s79, %s77
      %s81 = ssub.f32 %s78, %s80
      %v82 = vrcp.pop 2047.0
      %s83 = vtos %v82
      %s84 = smul.f32 %s81, %s83
      %s85 = smax.f32 %s84, 0.0
      %s86 = sld [smem:[#allocation2 + $0x2]]
      %s87 = sadd.f32 %s77, %s86
      %s88 = scalar_lea.smem [#allocation6], 0
      %89 = sst [smem:[%s88]] %s87
      %s90 = sadd.f32 %s85, 1e-05
      %v91 = vstv %s90
      %v92 = vrsqrt.pop %v91
      %v93 = vmul.f32 %v91, %v92
      %vm94 = vcmp.eq.f32.partialorder %v91, inf
      %v95 = vsel %vm94, %v91, %v93
      %vm96 = vcmp.eq.f32.partialorder %v91, 0.0
      %v97 = vand.u32 %v91, 2147483648
      %v98 = vsel %vm96, %v97, %v95
      %s99 = vtos %v98
      %v100 = vstv %s99
      %v101 = vrcp.pop %v100
      %s102 = vtos %v101
      %s103 = scalar_lea.smem [#allocation6], 1
      %104 = sst [smem:[%s103]] %s102
    $region17: #{tpu_custom_call.1} parent=1 // pred_fallthru
      _
    // Predicated region
    $region18: #{tpu_custom_call.1} parent=1 // pred_check
      _
    $region19: #{tpu_custom_call.1} parent=1 // pred_check_branch
      %106 = sbr.rel (0) target = $region21
    $region20: #{tpu_custom_call.1} parent=1 // pred_region
      %s108 = ssub.s32 16, 16
      %109 = vsyncadd [#allocation5], %s108
      %112 = dma.smem_to_hbm [#allocation6], 16, %s1, [#allocation5]
    $region21: #{tpu_custom_call.1} parent=1 // pred_fallthru
      _
    // Predicated region
    $region22: #{tpu_custom_call.1} parent=1 // pred_check
      _
    $region23: #{tpu_custom_call.1} parent=1 // pred_check_branch
      %114 = sbr.rel (0) target = $region25
    $region24: #{tpu_custom_call.1} parent=1 // pred_region
      %115 = dma.done [#allocation5], 16
    $region25: #{tpu_custom_call.1} parent=1 // pred_fallthru
      _
    %116 = sfence
    %117 = vsyncpa [#allocation4], 1
    %118 = vsyncpa [#allocation5], 1

</llo_original>
